<compile_context>
chip_gen: v7x
topology: tpu7x:2x2x1
jax: 0.10.0
libtpu: 0.0.40
codegen_flags: <defaults>
</compile_context>

<pallas_src>
import functools

import jax
import jax.numpy as jnp
from jax.experimental import pallas as pl
from jax.experimental.pallas import tpu as pltpu

LANE = 128
MAX_TILE_ROWS = 2048  # (2048, 128) f32 block = 1 MiB; tunable


def _sse_kernel(out_ref, tgt_ref, sse_ref, acc_ref, *,
                tile_rows, rows, tiles_per_split, full_tiles):
    """Per-split sum of squared errors into sse_ref[0, 0]."""
    c = pl.program_id(0)             # parallel split (v7x megacore)
    i = pl.program_id(1)             # tile index within this split
    t = c * tiles_per_split + i      # global tile index (may be a phantom tile)

    @pl.when(i == 0)
    def _init():
        acc_ref[...] = jnp.zeros_like(acc_ref)

    d = out_ref[...].astype(jnp.float32) - tgt_ref[...].astype(jnp.float32)
    d2 = d * d

    # Fully in-bounds tiles: pure VPU accumulate, no masking.
    @pl.when(t < full_tiles)
    def _acc_full():
        acc_ref[...] += d2

    # Ragged last tile / phantom tile of an odd split: mask rows >= `rows`.
    @pl.when(t >= full_tiles)
    def _acc_edge():
        row = t * tile_rows + jax.lax.broadcasted_iota(
            jnp.int32, (tile_rows, LANE), 0)
        acc_ref[...] += jnp.where(row < rows, d2, 0.0)

    # One cross-lane reduce + scalar SMEM store per split (epilogue only).
    @pl.when(i == tiles_per_split - 1)
    def _finalize():
        sse_ref[0, 0] = jnp.sum(acc_ref[...])


@jax.jit
def _sse_pallas(out, target):
    """Sum of squared errors over all elements, returned as float32."""
    n = out.size
    if n == 0:
        return jnp.float32(0.0)

    flat_o = out.reshape(-1)       # keeps native dtype
    flat_t = target.reshape(-1)

    if n % LANE != 0:
        # Rare ragged case: zero-pad both operands identically (diff == 0 in
        # the pad region -> SSE unchanged).  This is the only path that copies.
        pad = LANE - (n % LANE)
        flat_o = jnp.pad(flat_o, (0, pad))
        flat_t = jnp.pad(flat_t, (0, pad))

    rows = flat_o.shape[0] // LANE
    o2 = flat_o.reshape(rows, LANE)   # free bitcast for contiguous arrays
    t2 = flat_t.reshape(rows, LANE)

    tile_rows = rows if rows <= MAX_TILE_ROWS else MAX_TILE_ROWS
    num_tiles = -(-rows // tile_rows)
    full_tiles = rows // tile_rows            # tiles with no ragged rows
    nsplit = 2 if num_tiles >= 2 else 1       # one split per v7x TensorCore
    tiles_per_split = -(-num_tiles // nsplit)

    def tile_map(c, i):
        # Clamp so a phantom tile (odd tile count) re-reads a valid block; its
        # contribution is masked to zero inside the kernel.
        return (jnp.minimum(c * tiles_per_split + i, num_tiles - 1), 0)

    kernel = functools.partial(
        _sse_kernel, tile_rows=tile_rows, rows=rows,
        tiles_per_split=tiles_per_split, full_tiles=full_tiles)

    partial_sse = pl.pallas_call(
        kernel,
        out_shape=jax.ShapeDtypeStruct((nsplit, 1), jnp.float32),
        grid_spec=pltpu.PrefetchScalarGridSpec(
            num_scalar_prefetch=0,
            grid=(nsplit, tiles_per_split),
            in_specs=[
                # pipeline_mode=pl.Buffered(3) may help on v5e if a profile
                # shows exposed DMA; default double-buffering kept here.
                pl.BlockSpec((tile_rows, LANE), tile_map),
                pl.BlockSpec((tile_rows, LANE), tile_map),
            ],
            out_specs=pl.BlockSpec((1, 1), lambda c, i: (c, 0),
                                   memory_space=pltpu.SMEM),
            scratch_shapes=[pltpu.VMEM((tile_rows, LANE), jnp.float32)],
        ),
        compiler_params=pltpu.CompilerParams(
            dimension_semantics=("parallel", "arbitrary")),
    )(o2, t2)

    return jnp.sum(partial_sse)


def asd_loss(out, target, mu=None, logvar=None):
    """JAX/Pallas equivalent of the PyTorch ASDLoss.forward."""
    sse = _sse_pallas(out, target)
    loss = sse / jnp.float32(out.size)        # MSE with 'mean' reduction
    if mu is not None and logvar is not None:
        mu32 = jnp.asarray(mu, jnp.float32)
        lv32 = jnp.asarray(logvar, jnp.float32)
        kl = -0.5 * jnp.sum(1.0 + lv32 - jnp.exp(lv32) - mu32 * mu32)
        loss = loss + kl
    return loss


def _reference(out, target, mu=None, logvar=None):
    o = jnp.asarray(out, jnp.float32)
    t = jnp.asarray(target, jnp.float32)
    mse = jnp.mean((o - t) ** 2)
    if mu is not None and logvar is not None:
        mu = jnp.asarray(mu, jnp.float32)
        lv = jnp.asarray(logvar, jnp.float32)
        return mse + (-0.5) * jnp.sum(1.0 + lv - jnp.exp(lv) - mu * mu)
    return mse


if __name__ == "__main__":
    key = jax.random.PRNGKey(0)
    k1, k2, k3, k4, k5, k6, k7, k8 = jax.random.split(key, 8)

    # Shapes implied by the module: out/target NCHW [2,4,16,16]; mu/logvar [2,64].
    out = jax.random.normal(k1, (2, 4, 16, 16), jnp.float32)
    target = jax.random.normal(k2, (2, 4, 16, 16), jnp.float32)
    mu = 0.1 * jax.random.normal(k3, (2, 64), jnp.float32)
    logvar = 0.1 * jax.random.normal(k4, (2, 64), jnp.float32)

    # With KL term
    loss_kl = jax.block_until_ready(asd_loss(out, target, mu, logvar))
    ref_kl = _reference(out, target, mu, logvar)
    assert jnp.allclose(loss_kl, ref_kl, rtol=1e-5, atol=1e-5), (loss_kl, ref_kl)

    # MSE-only path
    loss_mse = jax.block_until_ready(asd_loss(out, target))
    ref_mse = _reference(out, target)
    assert jnp.allclose(loss_mse, ref_mse, rtol=1e-5, atol=1e-5), (loss_mse, ref_mse)

    # Multi-tile path: rows > MAX_TILE_ROWS, ragged last tile, 2-way split.
    big_o = jax.random.normal(k5, (3, 4, 160, 180), jnp.float32)  # 345600 elems
    big_t = jax.random.normal(k6, (3, 4, 160, 180), jnp.float32)
    loss_big = jax.block_until_ready(asd_loss(big_o, big_t))
    ref_big = _reference(big_o, big_t)
    assert jnp.allclose(loss_big, ref_big, rtol=1e-5, atol=1e-5), (loss_big, ref_big)

    # Ragged element count (not a multiple of 128) -> rare pad path.
    r_o = jax.random.normal(k7, (2, 5, 10, 10), jnp.float32)      # 1000 elems
    r_t = jax.random.normal(k8, (2, 5, 10, 10), jnp.float32)
    loss_r = jax.block_until_ready(asd_loss(r_o, r_t))
    ref_r = _reference(r_o, r_t)
    assert jnp.allclose(loss_r, ref_r, rtol=1e-5, atol=1e-5), (loss_r, ref_r)

    print("KERNEL_OK")
</pallas_src>

<mosaic_0001>
module attributes {stable_mosaic.version = 11 : i64} {
  func.func @_sse_kernel(%arg0: i32, %arg1: i32, %arg2: memref<16x128xf32, #tpu.memory_space<vmem>>, %arg3: memref<16x128xf32, #tpu.memory_space<vmem>>, %arg4: memref<1x1xf32, #tpu.memory_space<smem>>, %arg5: memref<16x128xf32, #tpu.memory_space<vmem>>) attributes {dimension_semantics = [#tpu.dimension_semantics<parallel>, #tpu.dimension_semantics<arbitrary>], iteration_bounds = array<i64: 1, 1>, scalar_prefetch = 0 : i64, scratch_operands = 1 : i64, tpu.core_type = #tpu.core_type<tc>, window_params = [{transform_indices = @transform_0, window_bounds = array<i64: 16, 128>}, {transform_indices = @transform_1, window_bounds = array<i64: 16, 128>}, {transform_indices = @transform_2, window_bounds = array<i64: 1, 1>}]} {
    %c1_i32 = arith.constant 1 : i32
    %0 = arith.muli %arg0, %c1_i32 : i32
    %1 = arith.addi %0, %arg1 : i32
    %c0_i32 = arith.constant 0 : i32
    %2 = arith.cmpi eq, %arg1, %c0_i32 : i32
    %3 = arith.extui %2 : i1 to i32
    %c0_i32_0 = arith.constant 0 : i32
    %4 = arith.cmpi ne, %3, %c0_i32_0 : i32
    scf.if %4 {
      %cst = arith.constant 0.000000e+00 : f32
      %18 = vector.broadcast %cst : f32 to vector<16x128xf32>
      %c0_10 = arith.constant 0 : index
      %c0_11 = arith.constant 0 : index
      %19 = vector.load %arg5[%c0_10, %c0_11] : memref<16x128xf32, #tpu.memory_space<vmem>>, vector<16x128xf32>
      tpu.vector_store %arg5[%c0_10, %c0_11], %18 {strides = array<i32>} : memref<16x128xf32, #tpu.memory_space<vmem>>, vector<16x128xf32>,
    } else {
    }
    %c0 = arith.constant 0 : index
    %c0_1 = arith.constant 0 : index
    %5 = vector.load %arg2[%c0, %c0_1] : memref<16x128xf32, #tpu.memory_space<vmem>>, vector<16x128xf32>
    %c0_2 = arith.constant 0 : index
    %c0_3 = arith.constant 0 : index
    %6 = vector.load %arg3[%c0_2, %c0_3] : memref<16x128xf32, #tpu.memory_space<vmem>>, vector<16x128xf32>
    %7 = arith.subf %5, %6 : vector<16x128xf32>
    %8 = arith.mulf %7, %7 : vector<16x128xf32>
    %c1_i32_4 = arith.constant 1 : i32
    %9 = arith.cmpi slt, %1, %c1_i32_4 : i32
    %10 = arith.extui %9 : i1 to i32
    %c0_i32_5 = arith.constant 0 : i32
    %11 = arith.cmpi ne, %10, %c0_i32_5 : i32
    scf.if %11 {
      %c0_10 = arith.constant 0 : index
      %c0_11 = arith.constant 0 : index
      %18 = vector.load %arg5[%c0_10, %c0_11] : memref<16x128xf32, #tpu.memory_space<vmem>>, vector<16x128xf32>
      %19 = arith.addf %18, %8 : vector<16x128xf32>
      %c0_12 = arith.constant 0 : index
      %c0_13 = arith.constant 0 : index
      %20 = vector.load %arg5[%c0_12, %c0_13] : memref<16x128xf32, #tpu.memory_space<vmem>>, vector<16x128xf32>
      tpu.vector_store %arg5[%c0_12, %c0_13], %19 {strides = array<i32>} : memref<16x128xf32, #tpu.memory_space<vmem>>, vector<16x128xf32>,
    } else {
    }
    %c1_i32_6 = arith.constant 1 : i32
    %12 = arith.cmpi sge, %1, %c1_i32_6 : i32
    %13 = arith.extui %12 : i1 to i32
    %c0_i32_7 = arith.constant 0 : i32
    %14 = arith.cmpi ne, %13, %c0_i32_7 : i32
    scf.if %14 {
      %c16_i32 = arith.constant 16 : i32
      %18 = arith.muli %1, %c16_i32 : i32
      %19 = tpu.iota {dimensions = array<i32: 0>} : vector<16x128xi32>
      %20 = vector.broadcast %18 : i32 to vector<16x128xi32>
      %21 = arith.addi %20, %19 : vector<16x128xi32>
      %c0_10 = arith.constant 0 : index
      %c0_11 = arith.constant 0 : index
      %22 = vector.load %arg5[%c0_10, %c0_11] : memref<16x128xf32, #tpu.memory_space<vmem>>, vector<16x128xf32>
      %c16_i32_12 = arith.constant 16 : i32
      %23 = vector.broadcast %c16_i32_12 : i32 to vector<16x128xi32>
      %24 = arith.cmpi slt, %21, %23 : vector<16x128xi32>
      %cst = arith.constant 0.000000e+00 : f32
      %25 = vector.broadcast %cst : f32 to vector<16x128xf32>
      %26 = arith.select %24, %8, %25 : vector<16x128xi1>, vector<16x128xf32>
      %27 = arith.addf %22, %26 : vector<16x128xf32>
      %c0_13 = arith.constant 0 : index
      %c0_14 = arith.constant 0 : index
      %28 = vector.load %arg5[%c0_13, %c0_14] : memref<16x128xf32, #tpu.memory_space<vmem>>, vector<16x128xf32>
      tpu.vector_store %arg5[%c0_13, %c0_14], %27 {strides = array<i32>} : memref<16x128xf32, #tpu.memory_space<vmem>>, vector<16x128xf32>,
    } else {
    }
    %c0_i32_8 = arith.constant 0 : i32
    %15 = arith.cmpi eq, %arg1, %c0_i32_8 : i32
    %16 = arith.extui %15 : i1 to i32
    %c0_i32_9 = arith.constant 0 : i32
    %17 = arith.cmpi ne, %16, %c0_i32_9 : i32
    scf.if %17 {
      %c0_10 = arith.constant 0 : index
      %c0_11 = arith.constant 0 : index
      %18 = vector.load %arg5[%c0_10, %c0_11] : memref<16x128xf32, #tpu.memory_space<vmem>>, vector<16x128xf32>
      %19 = vector.shape_cast %18 : vector<16x128xf32> to vector<1x16x128xf32>
      %cst = arith.constant dense<0.000000e+00> : vector<1xf32>
      %20 = vector.multi_reduction <add>, %19, %cst [1, 2] : vector<1x16x128xf32> to vector<1xf32>
      %21 = vector.shape_cast %20 : vector<1xf32> to vector<1x1x1xf32>
      %22 = vector.extract %21[0, 0, 0] : f32 from vector<1x1x1xf32>
      %c0_12 = arith.constant 0 : index
      %c0_13 = arith.constant 0 : index
      %23 = memref.load %arg4[%c0_12, %c0_13] : memref<1x1xf32, #tpu.memory_space<smem>>
      memref.store %22, %arg4[%c0_12, %c0_13] : memref<1x1xf32, #tpu.memory_space<smem>>
    } else {
    }
    return
  }
  func.func @transform_0(%arg0: i32, %arg1: i32) -> (i32, i32) {
    %c1_i32 = arith.constant 1 : i32
    %0 = arith.muli %arg0, %c1_i32 : i32
    %1 = arith.addi %0, %arg1 : i32
    %c0_i32 = arith.constant 0 : i32
    %2 = arith.minsi %1, %c0_i32 : i32
    %c0_i32_0 = arith.constant 0 : i32
    %c0_i32_1 = arith.constant 0 : i32
    return %2, %c0_i32_0 : i32, i32
  }
  func.func @transform_1(%arg0: i32, %arg1: i32) -> (i32, i32) {
    %c1_i32 = arith.constant 1 : i32
    %0 = arith.muli %arg0, %c1_i32 : i32
    %1 = arith.addi %0, %arg1 : i32
    %c0_i32 = arith.constant 0 : i32
    %2 = arith.minsi %1, %c0_i32 : i32
    %c0_i32_0 = arith.constant 0 : i32
    %c0_i32_1 = arith.constant 0 : i32
    return %2, %c0_i32_0 : i32, i32
  }
  func.func @transform_2(%arg0: i32, %arg1: i32) -> (i32, i32) {
    %c0_i32 = arith.constant 0 : i32
    %c0_i32_0 = arith.constant 0 : i32
    return %arg0, %c0_i32 : i32, i32
  }
}

</mosaic_0001>

<llo_original>
// kernel: _sse_pallas.1
$region0: #{_sse_pallas.1}
  #allocation0 [shape = 'u32[]', space=smem, size = 0x4, offset = 0x4, fixed_abs, tag = 'smem constant byte address 0x4 - core index']
  #allocation1 [shape = 'u32[144,128]{1,0:T(1,128)}', space=vmem, size = 0x12000, scoped, tag = 'internal scratch']
  #allocation2 [shape = 'f32[16,128]{1,0:T(8,128)}', space=vmem, size = 0x2000, scoped, tag = 'scratch operand']
  %s0 = inlined_call_operand.vmem [shape: f32[16,128], index: 0, kind: input, shape index: {}]
  %s1 = inlined_call_operand.vmem [shape: f32[16,128], index: 1, kind: input, shape index: {}]
  %s2 = inlined_call_operand.hbm [shape: f32[1,1], index: 2, kind: output, shape index: {}]
  %s3 = sld [smem:[#allocation0]]
  $region34: #{_sse_pallas.1} parent=0
    _
  %s5 = ssub.s32 1, %s3
  %s6 = scalar_select 0, %s5, %s3
  $region1: #{_sse_pallas.1} parent=0
    #allocation3 [shape = 'u8[512]{0}', space=smem, size = 0x200, scoped, tag = 'output window, operand 0, single buffered']
    #allocation4 [shape = 's32[1]{0}', space=sflag, size = 0x4, scoped, tag = 'scoped memory for _sse_pallas.1']
    %7 = vsyncpa [#allocation4], 0
    // Predicated region
    $region2: #{_sse_pallas.1} parent=1 // pred_check
      _
    $region3: #{_sse_pallas.1} parent=1 // pred_check_branch
      %9 = sbr.rel (0) target = $region5
    $region4: #{_sse_pallas.1} parent=1 // pred_region
      %s10 = sadd.s32 0, 0
      %p11 = scmp.lt.s32.totalorder %s10, 0
      %s12 = scalar_select %p11, %s10, 0
      %s13 = smul.u32 2, %s12
      %p14 = scmp.lt.s32.totalorder %s13, 1
      %s15 = scalar_select %p14, %s13, 1
      %s16 = smul.addr %s15, 8
      %s17 = scalar_lea.vmem %s0, %s16
      %s18 = sadd.s32 0, 0
      %p19 = scmp.lt.s32.totalorder %s18, 0
      %s20 = scalar_select %p19, %s18, 0
      %s21 = smul.u32 2, %s20
    $region5: #{_sse_pallas.1} parent=1 // pred_fallthru
      _
    // Predicated region
    $region6: #{_sse_pallas.1} parent=1 // pred_check
      _
    $region7: #{_sse_pallas.1} parent=1 // pred_check_branch
      %23 = sbr.rel (0) target = $region9
    $region8: #{_sse_pallas.1} parent=1 // pred_region
      %s24 = sadd.s32 0, 0
      %p25 = scmp.lt.s32.totalorder %s24, 0
      %s26 = scalar_select %p25, %s24, 0
      %s27 = smul.u32 2, %s26
      %p28 = scmp.lt.s32.totalorder %s27, 1
      %s29 = scalar_select %p28, %s27, 1
      %s30 = smul.addr %s29, 8
      %s31 = scalar_lea.vmem %s1, %s30
      %s32 = sadd.s32 0, 0
      %p33 = scmp.lt.s32.totalorder %s32, 0
      %s34 = scalar_select %p33, %s32, 0
      %s35 = smul.u32 2, %s34
    $region9: #{_sse_pallas.1} parent=1 // pred_fallthru
      _
    %s36 = sadd.s32 0, 0
    %p37 = scmp.lt.s32.totalorder %s36, 0
    %s38 = scalar_select %p37, %s36, 0
    %s39 = smul.u32 2, %s38
    %p40 = scmp.lt.s32.totalorder %s39, 1
    %s41 = scalar_select %p40, %s39, 1
    %s42 = smul.addr %s41, 8
    %s43 = scalar_lea.vmem %s0, %s42
    %s44 = sadd.s32 0, 0
    %p45 = scmp.lt.s32.totalorder %s44, 0
    %s46 = scalar_select %p45, %s44, 0
    %s47 = smul.u32 2, %s46
    %p48 = scmp.lt.s32.totalorder %s47, 1
    %s49 = scalar_select %p48, %s47, 1
    %s50 = smul.addr %s49, 8
    %s51 = scalar_lea.vmem %s1, %s50
    %s52 = sadd.s32 0, 0
    %p53 = scmp.lt.s32.totalorder %s52, 0
    %s54 = scalar_select %p53, %s52, 0
    %s55 = smul.u32 2, %s54
    %p56 = scmp.lt.s32.totalorder %s55, 1
    %s57 = scalar_select %p56, %s55, 1
    %s58 = smul.addr %s57, 8
    %s59 = scalar_lea.vmem %s0, %s58
    %s60 = sadd.s32 0, 0
    %p61 = scmp.lt.s32.totalorder %s60, 0
    %s62 = scalar_select %p61, %s60, 0
    %s63 = smul.u32 2, %s62
    %s64 = sadd.s32 0, 0
    %p65 = scmp.lt.s32.totalorder %s64, 0
    %s66 = scalar_select %p65, %s64, 0
    %s67 = smul.u32 2, %s66
    %p68 = scmp.lt.s32.totalorder %s67, 1
    %s69 = scalar_select %p68, %s67, 1
    %s70 = smul.addr %s69, 8
    %s71 = scalar_lea.vmem %s1, %s70
    %s72 = sadd.s32 0, 0
    %p73 = scmp.lt.s32.totalorder %s72, 0
    %s74 = scalar_select %p73, %s72, 0
    %s75 = smul.u32 2, %s74
    %s76 = sadd.s32 0, 0
    %p77 = scmp.eq.s32.totalorder 0, 0
    // Predicated region
    $region10: #{_sse_pallas.1} parent=1 // pred_check
      %p78 = pneg %p77
    $region11: #{_sse_pallas.1} parent=1 // pred_check_branch
      %80 = sbr.rel (%p78) target = $region13
    $region12: #{_sse_pallas.1} parent=1 // pred_region
      %81 = vst [vmem:[#allocation2] sm:$0xff] 0.0
      %82 = vst [vmem:[#allocation2 + $0x8] sm:$0xff] 0.0
    $region13: #{_sse_pallas.1} parent=1 // pred_fallthru
      _
    %v83 = vld [vmem:[%s59] sm:$0xff]
    %v84 = vld [vmem:[%s59 + $0x8] sm:$0xff]
    %v85 = vld [vmem:[%s71] sm:$0xff]
    %v86 = vld [vmem:[%s71 + $0x8] sm:$0xff]
    %v87 = vsub.f32 %v83, %v85
    %v88 = vsub.f32 %v84, %v86
    %v89 = vmul.f32 %v87, %v87
    %v90 = vmul.f32 %v88, %v88
    %p91 = scmp.lt.s32.totalorder %s76, 1
    // Predicated region
    $region14: #{_sse_pallas.1} parent=1 // pred_check
      %p92 = pneg %p91
    $region15: #{_sse_pallas.1} parent=1 // pred_check_branch
      %94 = sbr.rel (%p92) target = $region17
    $region16: #{_sse_pallas.1} parent=1 // pred_region
      %v95 = vld [vmem:[#allocation2] sm:$0xff]
      %v96 = vld [vmem:[#allocation2 + $0x8] sm:$0xff]
      %v97 = vadd.f32 %v95, %v89
      %v98 = vadd.f32 %v96, %v90
      %99 = vst [vmem:[#allocation2] sm:$0xff] %v97
      %100 = vst [vmem:[#allocation2 + $0x8] sm:$0xff] %v98
    $region17: #{_sse_pallas.1} parent=1 // pred_fallthru
      _
    %p101 = scmp.ge.s32.totalorder %s76, 1
    // Predicated region
    $region18: #{_sse_pallas.1} parent=1 // pred_check
      %p102 = pneg %p101
    $region19: #{_sse_pallas.1} parent=1 // pred_check_branch
      %104 = sbr.rel (%p102) target = $region21
    $region20: #{_sse_pallas.1} parent=1 // pred_region
      %s105 = smul.u32 %s76, 16
      %v106 = vlaneseq
      %v107 = vshrl.u32 %v106, 7
      %v108 = vadd.s32 %v107, 8
      %v109 = vstv %s105
      %v110 = vadd.s32 %v109, %v107
      %v111 = vadd.s32 %v109, %v108
      %v112 = vld [vmem:[#allocation2] sm:$0xff]
      %v113 = vld [vmem:[#allocation2 + $0x8] sm:$0xff]
      %vm114 = vcmp.lt.s32.totalorder %v110, 16
      %vm115 = vcmp.lt.s32.totalorder %v111, 16
      %v116 = vsel %vm114, %v89, 0.0
      %v117 = vsel %vm115, %v90, 0.0
      %v118 = vadd.f32 %v112, %v116
      %v119 = vadd.f32 %v113, %v117
      %120 = vst [vmem:[#allocation2] sm:$0xff] %v118
      %121 = vst [vmem:[#allocation2 + $0x8] sm:$0xff] %v119
    $region21: #{_sse_pallas.1} parent=1 // pred_fallthru
      _
    // Predicated region
    $region22: #{_sse_pallas.1} parent=1 // pred_check
      %p122 = pneg %p77
    $region23: #{_sse_pallas.1} parent=1 // pred_check_branch
      %124 = sbr.rel (%p122) target = $region25
    $region24: #{_sse_pallas.1} parent=1 // pred_region
      %v125 = vld [vmem:[#allocation2] sm:$0xff]
      %v126 = vld [vmem:[#allocation2 + $0x8] sm:$0xff]
      %v127 = vadd.f32 %v125, %v126
      %128 = vadd.xlane.f32.xlu0 %v127
      %v129 = vpop.xlane.xlu0 %128
      %v130 = vrot.slane %v129, 4
      %v131 = vadd.f32 %v129, %v130
      %v132 = vrot.slane %v131, 2
      %v133 = vadd.f32 %v131, %v132
      %v134 = vrot.slane %v133, 1
      %v135 = vadd.f32 %v133, %v134
      %s136 = vtos %v135
      %s137 = scalar_lea.smem [#allocation3], 0
      %138 = sst [smem:[%s137]] %s136
    $region25: #{_sse_pallas.1} parent=1 // pred_fallthru
      _
    // Predicated region
    $region26: #{_sse_pallas.1} parent=1 // pred_check
      _
    $region27: #{_sse_pallas.1} parent=1 // pred_check_branch
      %140 = sbr.rel (0) target = $region29
    $region28: #{_sse_pallas.1} parent=1 // pred_region
      %s142 = ssub.s32 16, 16
      %143 = vsyncadd [#allocation4], %s142
      %146 = dma.smem_to_hbm [#allocation3], 16, %s2, [#allocation4]
    $region29: #{_sse_pallas.1} parent=1 // pred_fallthru
      _
    // Predicated region
    $region30: #{_sse_pallas.1} parent=1 // pred_check
      _
    $region31: #{_sse_pallas.1} parent=1 // pred_check_branch
      %148 = sbr.rel (0) target = $region33
    $region32: #{_sse_pallas.1} parent=1 // pred_region
      %149 = dma.done [#allocation4], 16
    $region33: #{_sse_pallas.1} parent=1 // pred_fallthru
      _
    %150 = sfence
    %151 = vsyncpa [#allocation4], 1

</llo_original>
